<compile_context>
chip_gen: v7x
topology: tpu7x:2x2x1
jax: 0.10.0
libtpu: 0.0.40
codegen_flags: <defaults>
</compile_context>

<pallas_src>
import jax
import jax.numpy as jnp
from jax.experimental import pallas as pl
from jax.experimental.pallas import tpu as pltpu

LANE = 128     # lane width: feature dims padded to multiples of this
SUBLANE = 8    # f32 sublane width: batch tile must be a multiple of this


def _round_up(x, m):
    return (x + m - 1) // m * m


def _cdiv(a, b):
    return -(-a // b)


def _device_kind():
    try:
        return jax.devices()[0].device_kind.lower()
    except Exception:
        return ""


def _vmem_limit_bytes(kind):
    # v7x: 64 MiB physical per TC -> leave headroom. v5e/v6e: 128 MiB physical.
    if "v7" in kind:
        return 48 * 1024 * 1024
    return 100 * 1024 * 1024


# --------------------------------------------------------------------------- kernel
def mlp_kernel(x_ref, w1_ref, b1_ref, w2_ref, b2_ref, w3_ref, b3_ref, o_ref):
    """One batch tile: relu(relu(relu(x@w1+b1)@w2+b2)@w3+b3)."""

    def dense_relu(a, w_ref, b_ref):
        w = w_ref[...]
        if a.dtype != w.dtype:
            # Only the (tm, K) activation is cast per step; weights were pre-cast
            # in prepare_params(), so no O(K*N) VALU cast work under the MXU.
            a = a.astype(w.dtype)
        h = jnp.dot(a, w, preferred_element_type=jnp.float32)
        # Bias add + ReLU stay f32 on the VPU (safe on v5e: no bf16 VPU there).
        return jnp.maximum(h + b_ref[...], 0.0)

    h = dense_relu(x_ref[...], w1_ref, b1_ref)
    h = dense_relu(h, w2_ref, b2_ref)
    h = dense_relu(h, w3_ref, b3_ref)   # final ReLU matches the PyTorch module
    o_ref[...] = h.astype(o_ref.dtype)


# --------------------------------------------------------------------------- wrapper
def prepare_params(w1, b1, w2, b2, w3, b3, *, use_bf16_matmul=False):
    """Pad feature dims to lane multiples and (optionally) pre-cast weights to bf16.

    Call ONCE at init — this is deliberately off the per-forward path. Zero padding
    is exact: padded channels get 0 weight + 0 bias and stay 0 through ReLU.
    Biases are kept f32 (bias+ReLU run in f32 on the VPU).
    """
    input_dim, hidden = w1.shape
    out_dim = w3.shape[1]
    in_p = _round_up(input_dim, LANE)
    hid_p = _round_up(hidden, LANE)
    out_p = _round_up(out_dim, LANE)

    f32 = jnp.float32
    wdt = jnp.bfloat16 if use_bf16_matmul else f32

    w1p = jnp.zeros((in_p, hid_p), f32).at[:input_dim, :hidden].set(w1).astype(wdt)
    w2p = jnp.zeros((hid_p, hid_p), f32).at[:hidden, :hidden].set(w2).astype(wdt)
    w3p = jnp.zeros((hid_p, out_p), f32).at[:hidden, :out_dim].set(w3).astype(wdt)
    b1p = jnp.zeros((1, hid_p), f32).at[0, :hidden].set(b1)
    b2p = jnp.zeros((1, hid_p), f32).at[0, :hidden].set(b2)
    b3p = jnp.zeros((1, out_p), f32).at[0, :out_dim].set(b3)
    return (w1p, b1p, w2p, b2p, w3p, b3p)


def feedforward_nn(x, params, out_dim, *, block_m=None):
    """Fused forward pass of FeedForwardNN.

    x      : (batch, input_dim) f32
    params : output of prepare_params() — padded (in,out)-layout weights + f32 biases
    out_dim: logical output dim (for stripping lane padding)
    """
    w1p, b1p, w2p, b2p, w3p, b3p = params
    batch, input_dim = x.shape
    in_p = w1p.shape[0]
    out_p = w3p.shape[1]
    dt = x.dtype

    kind = _device_kind()
    is_v7x = "v7" in kind

    # Big tiles amortize the ~0.35us/step overhead; weights are resident so only the
    # x/out tiles scale with block_m. Keep <=512 on v7x (64 MiB VMEM), 1024 elsewhere.
    if block_m is None:
        block_m = 512 if is_v7x else 1024
    block_m = _round_up(max(int(block_m), SUBLANE), SUBLANE)

    # Balanced tiling: pick the step count first, then size tiles to fit — avoids the
    # old round_up(batch, tm) blow-up (batch=520 -> 528 rows, not 1024).
    n_steps = max(_cdiv(batch, block_m), 1)
    if is_v7x and batch > 256:
        n_steps = max(n_steps, 2)        # keep both v7x TensorCores busy
    tm = _round_up(_cdiv(batch, n_steps), SUBLANE)
    batch_p = tm * n_steps

    xp = x
    if batch_p != batch or in_p != input_dim:
        xp = jnp.zeros((batch_p, in_p), dt).at[:batch, :input_dim].set(x)

    # Weights / biases: constant block index across the grid -> fetched once and kept
    # VMEM-resident; Buffered(1) avoids allocating a useless second buffer.
    # TODO(synk): on v7x with hidden >= ~2048, w2 cannot stay fully resident
    # (f32 @ hidden=4096 is 64 MiB = the whole per-TC VMEM); use use_bf16_matmul=True
    # and/or K-tile layer 2 with an inner pltpu.emit_pipeline accumulating into a
    # (tm, hid_p) VMEM scratch instead of a resident w2 block.
    def resident(a):
        nd = a.ndim
        return pl.BlockSpec(a.shape, lambda i, nd=nd: (0,) * nd,
                            pipeline_mode=pl.Buffered(1))

    out = pl.pallas_call(
        mlp_kernel,
        out_shape=jax.ShapeDtypeStruct((batch_p, out_p), dt),
        grid=(n_steps,),
        in_specs=[
            pl.BlockSpec((tm, in_p), lambda i: (i, 0)),    # x: tiled over batch
            resident(w1p), resident(b1p),
            resident(w2p), resident(b2p),
            resident(w3p), resident(b3p),
        ],
        out_specs=pl.BlockSpec((tm, out_p), lambda i: (i, 0)),  # lane-dense output slab
        compiler_params=pltpu.CompilerParams(
            # Batch tiles are independent -> sharded across v7x's 2 TensorCores
            # (no-op on single-TC v5e/v6e).
            dimension_semantics=("parallel",),
            vmem_limit_bytes=_vmem_limit_bytes(kind),
        ),
    )(xp, w1p, b1p, w2p, b2p, w3p, b3p)

    # Strip batch/lane padding. (Callers that can consume the padded slab directly
    # should skip this slice.)
    return out[:batch, :out_dim]


def init_linear_params(key, in_dim, out_dim):
    """Deterministic init mimicking nn.Linear's uniform(-1/sqrt(in), 1/sqrt(in))."""
    kw, kb = jax.random.split(key)
    bound = 1.0 / jnp.sqrt(jnp.float32(in_dim))
    # stored as (in_dim, out_dim) so the kernel does x @ W directly
    w = jax.random.uniform(kw, (in_dim, out_dim), jnp.float32, -bound, bound)
    b = jax.random.uniform(kb, (out_dim,), jnp.float32, -bound, bound)
    return w, b


if __name__ == "__main__":
    # Small shapes consistent with the module: batch=8, input_dim=16, hidden=32, out=8.
    batch, input_dim, hidden, out = 8, 16, 32, 8

    key = jax.random.PRNGKey(0)
    kx, k1, k2, k3 = jax.random.split(key, 4)

    x = jax.random.normal(kx, (batch, input_dim), jnp.float32)
    w1, b1 = init_linear_params(k1, input_dim, hidden)
    w2, b2 = init_linear_params(k2, hidden, hidden)
    w3, b3 = init_linear_params(k3, hidden, out)

    # Pad / layout-prep the parameters once (off the per-forward path).
    params = prepare_params(w1, b1, w2, b2, w3, b3, use_bf16_matmul=False)

    # jit the forward so x-padding + kernel + slice live in one XLA executable.
    fwd = jax.jit(lambda xi: feedforward_nn(xi, params, out_dim=out))
    y = jax.block_until_ready(fwd(x))

    # Pure-JAX reference (same semantics as the PyTorch module: ReLU on every layer,
    # including the last).
    relu = lambda a: jnp.maximum(a, 0.0)
    y_ref = relu(relu(relu(x @ w1 + b1) @ w2 + b2) @ w3 + b3)
    assert y.shape == (batch, out)
    assert jnp.allclose(y, y_ref, atol=1e-5, rtol=1e-5)

    print("KERNEL_OK")
</pallas_src>

<mosaic_0001>
module attributes {stable_mosaic.version = 11 : i64} {
  func.func @mlp_kernel(%arg0: i32, %arg1: memref<8x128xf32, #tpu.memory_space<vmem>>, %arg2: memref<128x128xf32, #tpu.memory_space<vmem>>, %arg3: memref<1x128xf32, #tpu.memory_space<vmem>>, %arg4: memref<128x128xf32, #tpu.memory_space<vmem>>, %arg5: memref<1x128xf32, #tpu.memory_space<vmem>>, %arg6: memref<128x128xf32, #tpu.memory_space<vmem>>, %arg7: memref<1x128xf32, #tpu.memory_space<vmem>>, %arg8: memref<8x128xf32, #tpu.memory_space<vmem>>) attributes {dimension_semantics = [#tpu.dimension_semantics<parallel>], iteration_bounds = array<i64: 1>, scalar_prefetch = 0 : i64, scratch_operands = 0 : i64, tpu.core_type = #tpu.core_type<tc>, window_params = [{transform_indices = @transform_0, window_bounds = array<i64: 8, 128>}, {pipeline_mode = #tpu.pipeline_mode<synchronous>, transform_indices = @transform_1, window_bounds = array<i64: 128, 128>}, {pipeline_mode = #tpu.pipeline_mode<synchronous>, transform_indices = @transform_2, window_bounds = array<i64: 1, 128>}, {pipeline_mode = #tpu.pipeline_mode<synchronous>, transform_indices = @transform_3, window_bounds = array<i64: 128, 128>}, {pipeline_mode = #tpu.pipeline_mode<synchronous>, transform_indices = @transform_4, window_bounds = array<i64: 1, 128>}, {pipeline_mode = #tpu.pipeline_mode<synchronous>, transform_indices = @transform_5, window_bounds = array<i64: 128, 128>}, {pipeline_mode = #tpu.pipeline_mode<synchronous>, transform_indices = @transform_6, window_bounds = array<i64: 1, 128>}, {transform_indices = @transform_7, window_bounds = array<i64: 8, 128>}]} {
    %c0 = arith.constant 0 : index
    %c0_0 = arith.constant 0 : index
    %0 = vector.load %arg1[%c0, %c0_0] : memref<8x128xf32, #tpu.memory_space<vmem>>, vector<8x128xf32>
    %c0_1 = arith.constant 0 : index
    %c0_2 = arith.constant 0 : index
    %1 = vector.load %arg2[%c0_1, %c0_2] : memref<128x128xf32, #tpu.memory_space<vmem>>, vector<128x128xf32>
    %cst = arith.constant dense<0.000000e+00> : vector<8x128xf32>
    %2 = tpu.matmul %0, %1, %cst {dimension_numbers = #tpu.dot_dimension_numbers<[1], [0], [0], [1], [0, 0, 1, 1], [], []>} : vector<8x128xf32>, vector<128x128xf32>, vector<8x128xf32> -> vector<8x128xf32>
    %c0_3 = arith.constant 0 : index
    %c0_4 = arith.constant 0 : index
    %3 = vector.load %arg3[%c0_3, %c0_4] : memref<1x128xf32, #tpu.memory_space<vmem>>, vector<1x128xf32>
    %4 = vector.broadcast %3 : vector<1x128xf32> to vector<8x128xf32>
    %5 = arith.addf %2, %4 : vector<8x128xf32>
    %cst_5 = arith.constant 0.000000e+00 : f32
    %6 = vector.broadcast %cst_5 : f32 to vector<8x128xf32>
    %7 = arith.maximumf %5, %6 : vector<8x128xf32>
    %c0_6 = arith.constant 0 : index
    %c0_7 = arith.constant 0 : index
    %8 = vector.load %arg4[%c0_6, %c0_7] : memref<128x128xf32, #tpu.memory_space<vmem>>, vector<128x128xf32>
    %cst_8 = arith.constant dense<0.000000e+00> : vector<8x128xf32>
    %9 = tpu.matmul %7, %8, %cst_8 {dimension_numbers = #tpu.dot_dimension_numbers<[1], [0], [0], [1], [0, 0, 1, 1], [], []>} : vector<8x128xf32>, vector<128x128xf32>, vector<8x128xf32> -> vector<8x128xf32>
    %c0_9 = arith.constant 0 : index
    %c0_10 = arith.constant 0 : index
    %10 = vector.load %arg5[%c0_9, %c0_10] : memref<1x128xf32, #tpu.memory_space<vmem>>, vector<1x128xf32>
    %11 = vector.broadcast %10 : vector<1x128xf32> to vector<8x128xf32>
    %12 = arith.addf %9, %11 : vector<8x128xf32>
    %cst_11 = arith.constant 0.000000e+00 : f32
    %13 = vector.broadcast %cst_11 : f32 to vector<8x128xf32>
    %14 = arith.maximumf %12, %13 : vector<8x128xf32>
    %c0_12 = arith.constant 0 : index
    %c0_13 = arith.constant 0 : index
    %15 = vector.load %arg6[%c0_12, %c0_13] : memref<128x128xf32, #tpu.memory_space<vmem>>, vector<128x128xf32>
    %cst_14 = arith.constant dense<0.000000e+00> : vector<8x128xf32>
    %16 = tpu.matmul %14, %15, %cst_14 {dimension_numbers = #tpu.dot_dimension_numbers<[1], [0], [0], [1], [0, 0, 1, 1], [], []>} : vector<8x128xf32>, vector<128x128xf32>, vector<8x128xf32> -> vector<8x128xf32>
    %c0_15 = arith.constant 0 : index
    %c0_16 = arith.constant 0 : index
    %17 = vector.load %arg7[%c0_15, %c0_16] : memref<1x128xf32, #tpu.memory_space<vmem>>, vector<1x128xf32>
    %18 = vector.broadcast %17 : vector<1x128xf32> to vector<8x128xf32>
    %19 = arith.addf %16, %18 : vector<8x128xf32>
    %cst_17 = arith.constant 0.000000e+00 : f32
    %20 = vector.broadcast %cst_17 : f32 to vector<8x128xf32>
    %21 = arith.maximumf %19, %20 : vector<8x128xf32>
    %c0_18 = arith.constant 0 : index
    %c0_19 = arith.constant 0 : index
    %22 = vector.load %arg8[%c0_18, %c0_19] : memref<8x128xf32, #tpu.memory_space<vmem>>, vector<8x128xf32>
    tpu.vector_store %arg8[%c0_18, %c0_19], %21 {strides = array<i32>} : memref<8x128xf32, #tpu.memory_space<vmem>>, vector<8x128xf32>,
    return
  }
  func.func @transform_0(%arg0: i32) -> (i32, i32) {
    %c0_i32 = arith.constant 0 : i32
    %c0_i32_0 = arith.constant 0 : i32
    return %arg0, %c0_i32 : i32, i32
  }
  func.func @transform_1(%arg0: i32) -> (i32, i32) {
    %c0_i32 = arith.constant 0 : i32
    %c0_i32_0 = arith.constant 0 : i32
    %c0_i32_1 = arith.constant 0 : i32
    return %c0_i32, %c0_i32_0 : i32, i32
  }
  func.func @transform_2(%arg0: i32) -> (i32, i32) {
    %c0_i32 = arith.constant 0 : i32
    %c0_i32_0 = arith.constant 0 : i32
    %c0_i32_1 = arith.constant 0 : i32
    return %c0_i32, %c0_i32_0 : i32, i32
  }
  func.func @transform_3(%arg0: i32) -> (i32, i32) {
    %c0_i32 = arith.constant 0 : i32
    %c0_i32_0 = arith.constant 0 : i32
    %c0_i32_1 = arith.constant 0 : i32
    return %c0_i32, %c0_i32_0 : i32, i32
  }
  func.func @transform_4(%arg0: i32) -> (i32, i32) {
    %c0_i32 = arith.constant 0 : i32
    %c0_i32_0 = arith.constant 0 : i32
    %c0_i32_1 = arith.constant 0 : i32
    return %c0_i32, %c0_i32_0 : i32, i32
  }
  func.func @transform_5(%arg0: i32) -> (i32, i32) {
    %c0_i32 = arith.constant 0 : i32
    %c0_i32_0 = arith.constant 0 : i32
    %c0_i32_1 = arith.constant 0 : i32
    return %c0_i32, %c0_i32_0 : i32, i32
  }
  func.func @transform_6(%arg0: i32) -> (i32, i32) {
    %c0_i32 = arith.constant 0 : i32
    %c0_i32_0 = arith.constant 0 : i32
    %c0_i32_1 = arith.constant 0 : i32
    return %c0_i32, %c0_i32_0 : i32, i32
  }
  func.func @transform_7(%arg0: i32) -> (i32, i32) {
    %c0_i32 = arith.constant 0 : i32
    %c0_i32_0 = arith.constant 0 : i32
    return %arg0, %c0_i32 : i32, i32
  }
}

</mosaic_0001>

<llo_original>
// kernel: _lambda_.1
$region0: #{_lambda_.1}
  #allocation0 [shape = 'u32[]', space=smem, size = 0x4, offset = 0x4, fixed_abs, tag = 'smem constant byte address 0x4 - core index']
  #allocation1 [shape = 'u32[144,128]{1,0:T(1,128)}', space=vmem, size = 0x12000, scoped, tag = 'internal scratch']
  %s0 = inlined_call_operand.hbm [shape: f32[8,128], index: 0, kind: input, shape index: {}]
  %s1 = inlined_call_operand.hbm [shape: f32[128,128], index: 1, kind: input, shape index: {}]
  %s2 = inlined_call_operand.hbm [shape: f32[1,128], index: 2, kind: input, shape index: {}]
  %s3 = inlined_call_operand.hbm [shape: f32[128,128], index: 3, kind: input, shape index: {}]
  %s4 = inlined_call_operand.hbm [shape: f32[1,128], index: 4, kind: input, shape index: {}]
  %s5 = inlined_call_operand.hbm [shape: f32[128,128], index: 5, kind: input, shape index: {}]
  %s6 = inlined_call_operand.hbm [shape: f32[1,128], index: 6, kind: input, shape index: {}]
  %s7 = inlined_call_operand.hbm [shape: f32[8,128], index: 7, kind: output, shape index: {}]
  %s8 = sld [smem:[#allocation0]]
  $region66: #{_lambda_.1} parent=0
    _
  %s10 = ssub.s32 1, %s8
  %s11 = scalar_select 0, %s10, %s8
  $region1: #{_lambda_.1} parent=0
    #allocation2 [shape = 'u8[4096]{0}', space=vmem, size = 0x1000, scoped, tag = 'input window, operand 0, single buffered']
    #allocation3 [shape = 's32[1]{0}', space=sflag, size = 0x4, scoped, tag = 'scoped memory for _lambda_.1']
    #allocation4 [shape = 's32[1]{0}', space=sflag, size = 0x4, scoped, tag = 'scoped memory for _lambda_.1']
    #allocation5 [shape = 'u8[65536]{0}', space=vmem, size = 0x10000, scoped, tag = 'input window, operand 1, single buffered']
    #allocation6 [shape = 's32[1]{0}', space=sflag, size = 0x4, scoped, tag = 'scoped memory for _lambda_.1']
    #allocation7 [shape = 'u8[512]{0}', space=vmem, size = 0x400, scoped, tag = 'input window, operand 2, single buffered']
    #allocation8 [shape = 'u8[65536]{0}', space=vmem, size = 0x10000, scoped, tag = 'input window, operand 3, single buffered']
    #allocation9 [shape = 's32[1]{0}', space=sflag, size = 0x4, scoped, tag = 'scoped memory for _lambda_.1']
    #allocation10 [shape = 'u8[512]{0}', space=vmem, size = 0x400, scoped, tag = 'input window, operand 4, single buffered']
    #allocation11 [shape = 'u8[65536]{0}', space=vmem, size = 0x10000, scoped, tag = 'input window, operand 5, single buffered']
    #allocation12 [shape = 's32[1]{0}', space=sflag, size = 0x4, scoped, tag = 'scoped memory for _lambda_.1']
    #allocation13 [shape = 'u8[512]{0}', space=vmem, size = 0x400, scoped, tag = 'input window, operand 6, single buffered']
    #allocation14 [shape = 'u8[4096]{0}', space=vmem, size = 0x1000, scoped, tag = 'output window, operand 0, single buffered']
    %12 = vsyncpa [#allocation3], 0
    %13 = vsyncpa [#allocation6], 0
    %14 = vsyncpa [#allocation9], 0
    %15 = vsyncpa [#allocation12], 0
    %16 = vsyncpa [#allocation4], 0
    // Predicated region
    $region2: #{_lambda_.1} parent=1 // pred_check
      _
    $region3: #{_lambda_.1} parent=1 // pred_check_branch
      %18 = sbr.rel (0) target = $region5
    $region4: #{_lambda_.1} parent=1 // pred_region
      %s20 = ssub.s32 128, 128
      %21 = vsyncadd [#allocation3], %s20
      %s23 = sshll.u32 [#allocation2], 4
      %s24 = int_to_ptr.vmem [resolvable:$true] %s23
      %26 = dma.hbm_to_vmem [thread:$0]  %s0, 128, %s24, [#allocation3]
    $region5: #{_lambda_.1} parent=1 // pred_fallthru
      _
    // Predicated region
    $region6: #{_lambda_.1} parent=1 // pred_check
      _
    $region7: #{_lambda_.1} parent=1 // pred_check_branch
      %28 = sbr.rel (0) target = $region9
    $region8: #{_lambda_.1} parent=1 // pred_region
      %s30 = ssub.s32 2048, 2048
      %31 = vsyncadd [#allocation6], %s30
      %s32 = sshll.u32 [#allocation5], 4
      %s33 = int_to_ptr.vmem [resolvable:$true] %s32
      %38 = dma.hbm_to_vmem [thread:$0]  %s1, 2048, %s33, [#allocation6], 128, 128, 8
    $region9: #{_lambda_.1} parent=1 // pred_fallthru
      _
    // Predicated region
    $region10: #{_lambda_.1} parent=1 // pred_check
      _
    $region11: #{_lambda_.1} parent=1 // pred_check_branch
      %40 = sbr.rel (0) target = $region13
    $region12: #{_lambda_.1} parent=1 // pred_region
      %s42 = ssub.s32 16, 16
      %43 = vsyncadd [#allocation6], %s42
      %s45 = sshll.u32 [#allocation7], 4
      %s46 = int_to_ptr.vmem [resolvable:$true] %s45
      %48 = dma.hbm_to_vmem [thread:$0]  %s2, 16, %s46, [#allocation6]
    $region13: #{_lambda_.1} parent=1 // pred_fallthru
      _
    // Predicated region
    $region14: #{_lambda_.1} parent=1 // pred_check
      _
    $region15: #{_lambda_.1} parent=1 // pred_check_branch
      %50 = sbr.rel (0) target = $region17
    $region16: #{_lambda_.1} parent=1 // pred_region
      %s52 = ssub.s32 2048, 2048
      %53 = vsyncadd [#allocation9], %s52
      %s54 = sshll.u32 [#allocation8], 4
      %s55 = int_to_ptr.vmem [resolvable:$true] %s54
      %60 = dma.hbm_to_vmem [thread:$0]  %s3, 2048, %s55, [#allocation9], 128, 128, 8
    $region17: #{_lambda_.1} parent=1 // pred_fallthru
      _
    // Predicated region
    $region18: #{_lambda_.1} parent=1 // pred_check
      _
    $region19: #{_lambda_.1} parent=1 // pred_check_branch
      %62 = sbr.rel (0) target = $region21
    $region20: #{_lambda_.1} parent=1 // pred_region
      %s64 = ssub.s32 16, 16
      %65 = vsyncadd [#allocation9], %s64
      %s67 = sshll.u32 [#allocation10], 4
      %s68 = int_to_ptr.vmem [resolvable:$true] %s67
      %70 = dma.hbm_to_vmem [thread:$0]  %s4, 16, %s68, [#allocation9]
    $region21: #{_lambda_.1} parent=1 // pred_fallthru
      _
    // Predicated region
    $region22: #{_lambda_.1} parent=1 // pred_check
      _
    $region23: #{_lambda_.1} parent=1 // pred_check_branch
      %72 = sbr.rel (0) target = $region25
    $region24: #{_lambda_.1} parent=1 // pred_region
      %s74 = ssub.s32 2048, 2048
      %75 = vsyncadd [#allocation12], %s74
      %s76 = sshll.u32 [#allocation11], 4
      %s77 = int_to_ptr.vmem [resolvable:$true] %s76
      %82 = dma.hbm_to_vmem [thread:$0]  %s5, 2048, %s77, [#allocation12], 128, 128, 8
    $region25: #{_lambda_.1} parent=1 // pred_fallthru
      _
    // Predicated region
    $region26: #{_lambda_.1} parent=1 // pred_check
      _
    $region27: #{_lambda_.1} parent=1 // pred_check_branch
      %84 = sbr.rel (0) target = $region29
    $region28: #{_lambda_.1} parent=1 // pred_region
      %s86 = ssub.s32 16, 16
      %87 = vsyncadd [#allocation12], %s86
      %s89 = sshll.u32 [#allocation13], 4
      %s90 = int_to_ptr.vmem [resolvable:$true] %s89
      %92 = dma.hbm_to_vmem [thread:$0]  %s6, 16, %s90, [#allocation12]
    $region29: #{_lambda_.1} parent=1 // pred_fallthru
      _
    // Predicated region
    $region30: #{_lambda_.1} parent=1 // pred_check
      _
    $region31: #{_lambda_.1} parent=1 // pred_check_branch
      %94 = sbr.rel (0) target = $region33
    $region32: #{_lambda_.1} parent=1 // pred_region
      %95 = dma.done [#allocation3], 128
    $region33: #{_lambda_.1} parent=1 // pred_fallthru
      _
    // Predicated region
    $region34: #{_lambda_.1} parent=1 // pred_check
      _
    $region35: #{_lambda_.1} parent=1 // pred_check_branch
      %97 = sbr.rel (0) target = $region37
    $region36: #{_lambda_.1} parent=1 // pred_region
      %98 = dma.done [#allocation6], 2048
    $region37: #{_lambda_.1} parent=1 // pred_fallthru
      _
    // Predicated region
    $region38: #{_lambda_.1} parent=1 // pred_check
      _
    $region39: #{_lambda_.1} parent=1 // pred_check_branch
      %100 = sbr.rel (0) target = $region41
    $region40: #{_lambda_.1} parent=1 // pred_region
      %101 = dma.done [#allocation6], 16
    $region41: #{_lambda_.1} parent=1 // pred_fallthru
      _
    // Predicated region
    $region42: #{_lambda_.1} parent=1 // pred_check
      _
    $region43: #{_lambda_.1} parent=1 // pred_check_branch
      %103 = sbr.rel (0) target = $region45
    $region44: #{_lambda_.1} parent=1 // pred_region
      %104 = dma.done [#allocation9], 2048
    $region45: #{_lambda_.1} parent=1 // pred_fallthru
      _
    // Predicated region
    $region46: #{_lambda_.1} parent=1 // pred_check
      _
    $region47: #{_lambda_.1} parent=1 // pred_check_branch
      %106 = sbr.rel (0) target = $region49
    $region48: #{_lambda_.1} parent=1 // pred_region
      %107 = dma.done [#allocation9], 16
    $region49: #{_lambda_.1} parent=1 // pred_fallthru
      _
    // Predicated region
    $region50: #{_lambda_.1} parent=1 // pred_check
      _
    $region51: #{_lambda_.1} parent=1 // pred_check_branch
      %109 = sbr.rel (0) target = $region53
    $region52: #{_lambda_.1} parent=1 // pred_region
      %110 = dma.done [#allocation12], 2048
    $region53: #{_lambda_.1} parent=1 // pred_fallthru
      _
    // Predicated region
    $region54: #{_lambda_.1} parent=1 // pred_check
      _
    $region55: #{_lambda_.1} parent=1 // pred_check_branch
      %112 = sbr.rel (0) target = $region57
    $region56: #{_lambda_.1} parent=1 // pred_region
      %113 = dma.done [#allocation12], 16
    $region57: #{_lambda_.1} parent=1 // pred_fallthru
      _
    %v114 = vld [vmem:[#allocation2] sm:$0xff]
    %v115 = vld [vmem:[#allocation5] sm:$0xff]
    %v116 = vld [vmem:[#allocation5 + $0x8] sm:$0xff]
    %v117 = vld [vmem:[#allocation5 + $0x10] sm:$0xff]
    %v118 = vld [vmem:[#allocation5 + $0x18] sm:$0xff]
    %v119 = vld [vmem:[#allocation5 + $0x20] sm:$0xff]
    %v120 = vld [vmem:[#allocation5 + $0x28] sm:$0xff]
    %v121 = vld [vmem:[#allocation5 + $0x30] sm:$0xff]
    %v122 = vld [vmem:[#allocation5 + $0x38] sm:$0xff]
    %v123 = vld [vmem:[#allocation5 + $0x40] sm:$0xff]
    %v124 = vld [vmem:[#allocation5 + $0x48] sm:$0xff]
    %v125 = vld [vmem:[#allocation5 + $0x50] sm:$0xff]
    %v126 = vld [vmem:[#allocation5 + $0x58] sm:$0xff]
    %v127 = vld [vmem:[#allocation5 + $0x60] sm:$0xff]
    %v128 = vld [vmem:[#allocation5 + $0x68] sm:$0xff]
    %v129 = vld [vmem:[#allocation5 + $0x70] sm:$0xff]
    %v130 = vld [vmem:[#allocation5 + $0x78] sm:$0xff]
    %v131 = vld [vmem:[#allocation7] sm:$0x1]
    %v133 = vlaneseq
    %v134 = vshrl.u32 %v133, 7
    %v135 = vsub.s32 0, %v134
    %v136 = vrot.slane %v131, %v135
    %138 = vmatprep.subr.mxu0 0.0
    %139 = vmatpush1.msra.mxu0 %v115
    %140 = vmatprep.subr.mxu0 0.0
    %141 = vmatpush1.msra.mxu0 %v116
    %142 = vmatprep.subr.mxu0 0.0
    %143 = vmatpush1.msra.mxu0 %v117
    %144 = vmatprep.subr.mxu0 0.0
    %145 = vmatpush1.msra.mxu0 %v118
    %146 = vmatprep.subr.mxu0 0.0
    %147 = vmatpush1.msra.mxu0 %v119
    %148 = vmatprep.subr.mxu0 0.0
    %149 = vmatpush1.msra.mxu0 %v120
    %150 = vmatprep.subr.mxu0 0.0
    %151 = vmatpush1.msra.mxu0 %v121
    %152 = vmatprep.subr.mxu0 0.0
    %153 = vmatpush1.msra.mxu0 %v122
    %154 = vmatprep.subr.mxu0 0.0
    %155 = vmatpush1.msra.mxu0 %v123
    %156 = vmatprep.subr.mxu0 0.0
    %157 = vmatpush1.msra.mxu0 %v124
    %158 = vmatprep.subr.mxu0 0.0
    %159 = vmatpush1.msra.mxu0 %v125
    %160 = vmatprep.subr.mxu0 0.0
    %161 = vmatpush1.msra.mxu0 %v126
    %162 = vmatprep.subr.mxu0 0.0
    %163 = vmatpush1.msra.mxu0 %v127
    %164 = vmatprep.subr.mxu0 0.0
    %165 = vmatpush1.msra.mxu0 %v128
    %166 = vmatprep.subr.mxu0 0.0
    %167 = vmatpush1.msra.mxu0 %v129
    %168 = vmatprep.subr.mxu0 0.0
    %169 = vmatpush1.msra.mxu0 %v130
    %170 = vmatprep.subr.mxu0 0.0
    %171 = vmatpush1.msra.mxu0 0.0
    %172 = vmatprep.subr.mxu0 0.0
    %173 = vmatpush1.msra.mxu0 0.0
    %174 = vmatprep.subr.mxu0 0.0
    %175 = vmatpush1.msra.mxu0 0.0
    %176 = vmatprep.subr.mxu0 0.0
    %177 = vmatpush1.msra.mxu0 0.0
    %178 = vmatprep.subr.mxu0 0.0
    %179 = vmatpush1.msra.mxu0 0.0
    %180 = vmatprep.subr.mxu0 0.0
    %181 = vmatpush1.msra.mxu0 0.0
    %182 = vmatprep.subr.mxu0 0.0
    %183 = vmatpush1.msra.mxu0 0.0
    %184 = vmatprep.subr.mxu0 0.0
    %185 = vmatpush1.msra.mxu0 0.0
    %186 = vmatprep.subr.mxu0 0.0
    %187 = vmatpush1.msra.mxu0 0.0
    %188 = vmatprep.subr.mxu0 0.0
    %189 = vmatpush1.msra.mxu0 0.0
    %190 = vmatprep.subr.mxu0 0.0
    %191 = vmatpush1.msra.mxu0 0.0
    %192 = vmatprep.subr.mxu0 0.0
    %193 = vmatpush1.msra.mxu0 0.0
    %194 = vmatprep.subr.mxu0 0.0
    %195 = vmatpush1.msra.mxu0 0.0
    %196 = vmatprep.subr.mxu0 0.0
    %197 = vmatpush1.msra.mxu0 0.0
    %198 = vmatprep.subr.mxu0 0.0
    %199 = vmatpush1.msra.mxu0 0.0
    %200 = vmatprep.subr.mxu0 0.0
    %201 = vmatpush1.msra.mxu0 0.0
    %202 = vmatprep.mubr.f32.mxu0 0.0
    %203 = vmatmul.mubr.f32.gmra.mrb[0].mxu0 %v114
    %v204 = vpop.f32.mrb[0].mxu0
    %v205 = vadd.f32 %v136, %v204
    %v206 = vpop.f32.mrb[0].mxu0
    %207 = vdwg.mxu0
    %v208 = vmax.f32 %v205, 0.0
    %v209 = vld [vmem:[#allocation8] sm:$0xff]
    %v210 = vld [vmem:[#allocation8 + $0x8] sm:$0xff]
    %v211 = vld [vmem:[#allocation8 + $0x10] sm:$0xff]
    %v212 = vld [vmem:[#allocation8 + $0x18] sm:$0xff]
    %v213 = vld [vmem:[#allocation8 + $0x20] sm:$0xff]
    %v214 = vld [vmem:[#allocation8 + $0x28] sm:$0xff]
    %v215 = vld [vmem:[#allocation8 + $0x30] sm:$0xff]
    %v216 = vld [vmem:[#allocation8 + $0x38] sm:$0xff]
    %v217 = vld [vmem:[#allocation8 + $0x40] sm:$0xff]
    %v218 = vld [vmem:[#allocation8 + $0x48] sm:$0xff]
    %v219 = vld [vmem:[#allocation8 + $0x50] sm:$0xff]
    %v220 = vld [vmem:[#allocation8 + $0x58] sm:$0xff]
    %v221 = vld [vmem:[#allocation8 + $0x60] sm:$0xff]
    %v222 = vld [vmem:[#allocation8 + $0x68] sm:$0xff]
    %v223 = vld [vmem:[#allocation8 + $0x70] sm:$0xff]
    %v224 = vld [vmem:[#allocation8 + $0x78] sm:$0xff]
    %v225 = vld [vmem:[#allocation10] sm:$0x1]
    %v227 = vlaneseq
    %v228 = vshrl.u32 %v227, 7
    %v229 = vsub.s32 0, %v228
    %v230 = vrot.slane %v225, %v229
    %232 = vmatprep.subr.mxu0 0.0
    %233 = vmatpush1.msra.mxu0 %v209
    %234 = vmatprep.subr.mxu0 0.0
    %235 = vmatpush1.msra.mxu0 %v210
    %236 = vmatprep.subr.mxu0 0.0
    %237 = vmatpush1.msra.mxu0 %v211
    %238 = vmatprep.subr.mxu0 0.0
    %239 = vmatpush1.msra.mxu0 %v212
    %240 = vmatprep.subr.mxu0 0.0
    %241 = vmatpush1.msra.mxu0 %v213
    %242 = vmatprep.subr.mxu0 0.0
    %243 = vmatpush1.msra.mxu0 %v214
    %244 = vmatprep.subr.mxu0 0.0
    %245 = vmatpush1.msra.mxu0 %v215
    %246 = vmatprep.subr.mxu0 0.0
    %247 = vmatpush1.msra.mxu0 %v216
    %248 = vmatprep.subr.mxu0 0.0
    %249 = vmatpush1.msra.mxu0 %v217
    %250 = vmatprep.subr.mxu0 0.0
    %251 = vmatpush1.msra.mxu0 %v218
    %252 = vmatprep.subr.mxu0 0.0
    %253 = vmatpush1.msra.mxu0 %v219
    %254 = vmatprep.subr.mxu0 0.0
    %255 = vmatpush1.msra.mxu0 %v220
    %256 = vmatprep.subr.mxu0 0.0
    %257 = vmatpush1.msra.mxu0 %v221
    %258 = vmatprep.subr.mxu0 0.0
    %259 = vmatpush1.msra.mxu0 %v222
    %260 = vmatprep.subr.mxu0 0.0
    %261 = vmatpush1.msra.mxu0 %v223
    %262 = vmatprep.subr.mxu0 0.0
    %263 = vmatpush1.msra.mxu0 %v224
    %264 = vmatprep.subr.mxu0 0.0
    %265 = vmatpush1.msra.mxu0 0.0
    %266 = vmatprep.subr.mxu0 0.0
    %267 = vmatpush1.msra.mxu0 0.0
    %268 = vmatprep.subr.mxu0 0.0
    %269 = vmatpush1.msra.mxu0 0.0
    %270 = vmatprep.subr.mxu0 0.0
    %271 = vmatpush1.msra.mxu0 0.0
    %272 = vmatprep.subr.mxu0 0.0
    %273 = vmatpush1.msra.mxu0 0.0
    %274 = vmatprep.subr.mxu0 0.0
    %275 = vmatpush1.msra.mxu0 0.0
    %276 = vmatprep.subr.mxu0 0.0
    %277 = vmatpush1.msra.mxu0 0.0
    %278 = vmatprep.subr.mxu0 0.0
    %279 = vmatpush1.msra.mxu0 0.0
    %280 = vmatprep.subr.mxu0 0.0
    %281 = vmatpush1.msra.mxu0 0.0
    %282 = vmatprep.subr.mxu0 0.0
    %283 = vmatpush1.msra.mxu0 0.0
    %284 = vmatprep.subr.mxu0 0.0
    %285 = vmatpush1.msra.mxu0 0.0
    %286 = vmatprep.subr.mxu0 0.0
    %287 = vmatpush1.msra.mxu0 0.0
    %288 = vmatprep.subr.mxu0 0.0
    %289 = vmatpush1.msra.mxu0 0.0
    %290 = vmatprep.subr.mxu0 0.0
    %291 = vmatpush1.msra.mxu0 0.0
    %292 = vmatprep.subr.mxu0 0.0
    %293 = vmatpush1.msra.mxu0 0.0
    %294 = vmatprep.subr.mxu0 0.0
    %295 = vmatpush1.msra.mxu0 0.0
    %296 = vmatprep.mubr.f32.mxu0 0.0
    %297 = vmatmul.mubr.f32.gmra.mrb[0].mxu0 %v208
    %v298 = vpop.f32.mrb[0].mxu0
    %v299 = vadd.f32 %v230, %v298
    %v300 = vpop.f32.mrb[0].mxu0
    %301 = vdwg.mxu0
    %v302 = vmax.f32 %v299, 0.0
    %v303 = vld [vmem:[#allocation11] sm:$0xff]
    %v304 = vld [vmem:[#allocation11 + $0x8] sm:$0xff]
    %v305 = vld [vmem:[#allocation11 + $0x10] sm:$0xff]
    %v306 = vld [vmem:[#allocation11 + $0x18] sm:$0xff]
    %v307 = vld [vmem:[#allocation11 + $0x20] sm:$0xff]
    %v308 = vld [vmem:[#allocation11 + $0x28] sm:$0xff]
    %v309 = vld [vmem:[#allocation11 + $0x30] sm:$0xff]
    %v310 = vld [vmem:[#allocation11 + $0x38] sm:$0xff]
    %v311 = vld [vmem:[#allocation11 + $0x40] sm:$0xff]
    %v312 = vld [vmem:[#allocation11 + $0x48] sm:$0xff]
    %v313 = vld [vmem:[#allocation11 + $0x50] sm:$0xff]
    %v314 = vld [vmem:[#allocation11 + $0x58] sm:$0xff]
    %v315 = vld [vmem:[#allocation11 + $0x60] sm:$0xff]
    %v316 = vld [vmem:[#allocation11 + $0x68] sm:$0xff]
    %v317 = vld [vmem:[#allocation11 + $0x70] sm:$0xff]
    %v318 = vld [vmem:[#allocation11 + $0x78] sm:$0xff]
    %v319 = vld [vmem:[#allocation13] sm:$0x1]
    %v321 = vlaneseq
    %v322 = vshrl.u32 %v321, 7
    %v323 = vsub.s32 0, %v322
    %v324 = vrot.slane %v319, %v323
    %326 = vmatprep.subr.mxu0 0.0
    %327 = vmatpush1.msra.mxu0 %v303
    %328 = vmatprep.subr.mxu0 0.0
    %329 = vmatpush1.msra.mxu0 %v304
    %330 = vmatprep.subr.mxu0 0.0
    %331 = vmatpush1.msra.mxu0 %v305
    %332 = vmatprep.subr.mxu0 0.0
    %333 = vmatpush1.msra.mxu0 %v306
    %334 = vmatprep.subr.mxu0 0.0
    %335 = vmatpush1.msra.mxu0 %v307
    %336 = vmatprep.subr.mxu0 0.0
    %337 = vmatpush1.msra.mxu0 %v308
    %338 = vmatprep.subr.mxu0 0.0
    %339 = vmatpush1.msra.mxu0 %v309
    %340 = vmatprep.subr.mxu0 0.0
    %341 = vmatpush1.msra.mxu0 %v310
    %342 = vmatprep.subr.mxu0 0.0
    %343 = vmatpush1.msra.mxu0 %v311
    %344 = vmatprep.subr.mxu0 0.0
    %345 = vmatpush1.msra.mxu0 %v312
    %346 = vmatprep.subr.mxu0 0.0
    %347 = vmatpush1.msra.mxu0 %v313
    %348 = vmatprep.subr.mxu0 0.0
    %349 = vmatpush1.msra.mxu0 %v314
    %350 = vmatprep.subr.mxu0 0.0
    %351 = vmatpush1.msra.mxu0 %v315
    %352 = vmatprep.subr.mxu0 0.0
    %353 = vmatpush1.msra.mxu0 %v316
    %354 = vmatprep.subr.mxu0 0.0
    %355 = vmatpush1.msra.mxu0 %v317
    %356 = vmatprep.subr.mxu0 0.0
    %357 = vmatpush1.msra.mxu0 %v318
    %358 = vmatprep.subr.mxu0 0.0
    %359 = vmatpush1.msra.mxu0 0.0
    %360 = vmatprep.subr.mxu0 0.0
    %361 = vmatpush1.msra.mxu0 0.0
    %362 = vmatprep.subr.mxu0 0.0
    %363 = vmatpush1.msra.mxu0 0.0
    %364 = vmatprep.subr.mxu0 0.0
    %365 = vmatpush1.msra.mxu0 0.0
    %366 = vmatprep.subr.mxu0 0.0
    %367 = vmatpush1.msra.mxu0 0.0
    %368 = vmatprep.subr.mxu0 0.0
    %369 = vmatpush1.msra.mxu0 0.0
    %370 = vmatprep.subr.mxu0 0.0
    %371 = vmatpush1.msra.mxu0 0.0
    %372 = vmatprep.subr.mxu0 0.0
    %373 = vmatpush1.msra.mxu0 0.0
    %374 = vmatprep.subr.mxu0 0.0
    %375 = vmatpush1.msra.mxu0 0.0
    %376 = vmatprep.subr.mxu0 0.0
    %377 = vmatpush1.msra.mxu0 0.0
    %378 = vmatprep.subr.mxu0 0.0
    %379 = vmatpush1.msra.mxu0 0.0
    %380 = vmatprep.subr.mxu0 0.0
    %381 = vmatpush1.msra.mxu0 0.0
    %382 = vmatprep.subr.mxu0 0.0
    %383 = vmatpush1.msra.mxu0 0.0
    %384 = vmatprep.subr.mxu0 0.0
    %385 = vmatpush1.msra.mxu0 0.0
    %386 = vmatprep.subr.mxu0 0.0
    %387 = vmatpush1.msra.mxu0 0.0
    %388 = vmatprep.subr.mxu0 0.0
    %389 = vmatpush1.msra.mxu0 0.0
    %390 = vmatprep.mubr.f32.mxu0 0.0
    %391 = vmatmul.mubr.f32.gmra.mrb[0].mxu0 %v302
    %v392 = vpop.f32.mrb[0].mxu0
    %v393 = vadd.f32 %v324, %v392
    %v394 = vpop.f32.mrb[0].mxu0
    %395 = vdwg.mxu0
    %v396 = vmax.f32 %v393, 0.0
    %397 = vst [vmem:[#allocation14] sm:$0xff] %v396
    // Predicated region
    $region58: #{_lambda_.1} parent=1 // pred_check
      _
    $region59: #{_lambda_.1} parent=1 // pred_check_branch
      %399 = sbr.rel (0) target = $region61
    $region60: #{_lambda_.1} parent=1 // pred_region
      %s401 = ssub.s32 128, 128
      %402 = vsyncadd [#allocation4], %s401
      %s404 = sshll.u32 [#allocation14], 4
      %s405 = int_to_ptr.vmem [resolvable:$true] %s404
      %407 = dma.vmem_to_hbm [thread:$0]  %s405, 128, %s7, [#allocation4]
    $region61: #{_lambda_.1} parent=1 // pred_fallthru
      _
    // Predicated region
    $region62: #{_lambda_.1} parent=1 // pred_check
      _
    $region63: #{_lambda_.1} parent=1 // pred_check_branch
      %409 = sbr.rel (0) target = $region65
    $region64: #{_lambda_.1} parent=1 // pred_region
      %410 = dma.done [#allocation4], 128
    $region65: #{_lambda_.1} parent=1 // pred_fallthru
      _
    %411 = vsyncpa [#allocation3], 1
    %412 = vsyncpa [#allocation6], 1
    %413 = vsyncpa [#allocation9], 1
    %414 = vsyncpa [#allocation12], 1
    %415 = vsyncpa [#allocation4], 1

</llo_original>
